<compile_context>
chip_gen: v7x
topology: tpu7x:2x2x1
jax: 0.10.0
libtpu: 0.0.40
codegen_flags: <defaults>
</compile_context>

<pallas_src>
import jax
import jax.numpy as jnp
from jax.experimental import pallas as pl
from jax.experimental.pallas import tpu as pltpu


def adaln_kernel(x_ref, w_ref, b_ref, o_ref):
    """One (block_m, D) token tile: o = SiLU(x) @ W + b."""
    x = x_ref[...]
    if x.dtype == jnp.bfloat16:
        # Native bf16 activation math (v6e/v7x VPU/EUP); halves vreg pressure.
        h = x * jax.nn.sigmoid(x)
    else:
        xf = x.astype(jnp.float32)
        h = xf * jax.nn.sigmoid(xf)
    # Feed the MXU in the weight's dtype with f32 accumulation.
    y = jnp.dot(h.astype(w_ref.dtype), w_ref[...],
                preferred_element_type=jnp.float32)
    o_ref[...] = (y + b_ref[...].astype(jnp.float32)).astype(o_ref.dtype)


def _round_up(n, m):
    return ((n + m - 1) // m) * m


def _sublane_multiple(dtype):
    size = jnp.dtype(dtype).itemsize
    if size >= 4:
        return 8
    if size == 2:
        return 16
    return 32


def _vmem_capacity_bytes():
    """Best-effort physical VMEM per TensorCore; conservative fallback."""
    try:
        return int(pltpu.get_tpu_info().vmem_capacity_bytes)
    except Exception:
        pass
    try:
        kind = jax.devices()[0].device_kind.lower()
        if "v7" in kind:
            return 64 * 1024 * 1024
        if "v5" in kind or "v6" in kind:
            return 128 * 1024 * 1024
    except Exception:
        pass
    return 64 * 1024 * 1024  # v7x-conservative default


def _footprint_bytes(block_m, d, dout, x_dtype, w_dtype, out_dtype):
    """VMEM footprint: double-buffered x/out tiles, single-buffered W/b, plus
    the implicit f32 matmul accumulator."""
    xb = 2 * block_m * d * jnp.dtype(x_dtype).itemsize
    wb = d * dout * jnp.dtype(w_dtype).itemsize        # pl.Buffered(1): 1 copy
    bb = dout * jnp.dtype(w_dtype).itemsize
    ob = 2 * block_m * dout * jnp.dtype(out_dtype).itemsize
    accb = block_m * dout * 4                          # f32 MXU accumulator
    return xb + wb + bb + ob + accb


def adaln_forward(x, w, b, *, block_m=None, vmem_limit_bytes=None):
    """AdaLN forward: SiLU(x) @ W + b.

    x: [B, T, D]; w: [D, D*scale] (transposed vs torch Linear); b: [D*scale]
    -> [B, T, D*scale] in x.dtype.
    """
    B, T, D = x.shape
    Dout = w.shape[1]
    M = B * T

    vmem_cap = _vmem_capacity_bytes()
    is_small_vmem = vmem_cap <= 64 * 1024 * 1024
    # Headroom below physical VMEM for compiler scratch.
    vmem_budget = (56 if is_small_vmem else 100) * 1024 * 1024

    sub = _sublane_multiple(x.dtype)
    if block_m is None:
        # Bigger tiles on 128-MiB parts (v5e/v6e hit ~85% of HBM roofline at
        # >=512 rows); smaller on 64-MiB v7x where double-buffered out tiles +
        # the f32 accumulator dominate.  Also aim for >=2 grid steps so the
        # "parallel" axis feeds both v7x TensorCores.
        cap_rows = 256 if is_small_vmem else 1024
        block_m = min(cap_rows, _round_up(pl.cdiv(M, 2), sub))
    block_m = max(sub, _round_up(block_m, sub))
    # Shrink until the footprint fits the per-generation budget.
    while (block_m > sub and
           _footprint_bytes(block_m, D, Dout, x.dtype, w.dtype, x.dtype)
           > vmem_budget):
        block_m = max(sub, _round_up(block_m // 2, sub))

    if vmem_limit_bytes is None:
        need = _footprint_bytes(block_m, D, Dout, x.dtype, w.dtype, x.dtype)
        # + one extra W buffer of slack so the double-buffered-W fallback also
        # fits; a generous scoped limit costs nothing if unused.
        need += D * Dout * jnp.dtype(w.dtype).itemsize
        vmem_limit_bytes = min(
            vmem_budget,
            max(16 * 1024 * 1024,
                _round_up(int(need * 1.25) + (2 << 20), 1 << 20)))

    num_tiles = pl.cdiv(M, block_m)

    x2 = x.reshape(M, D)
    b2 = b.reshape(1, Dout)

    def _in_specs(single_buffer_weights):
        kw = {"pipeline_mode": pl.Buffered(1)} if single_buffer_weights else {}
        return [
            pl.BlockSpec((block_m, D), lambda i: (i, 0)),       # x streams over M
            pl.BlockSpec((D, Dout), lambda i: (0, 0), **kw),    # W: VMEM-resident
            pl.BlockSpec((1, Dout), lambda i: (0, 0), **kw),    # b: VMEM-resident
        ]

    def _run(single_buffer_weights):
        return pl.pallas_call(
            adaln_kernel,
            out_shape=jax.ShapeDtypeStruct((M, Dout), x.dtype),
            grid_spec=pltpu.PrefetchScalarGridSpec(
                num_scalar_prefetch=0,
                grid=(num_tiles,),
                in_specs=_in_specs(single_buffer_weights),
                # No pad/slice: the partial tail block (if any) is masked on
                # writeback; pad rows never contaminate valid rows (row-wise
                # matmul) and are never written back.
                out_specs=pl.BlockSpec((block_m, Dout), lambda i: (i, 0)),
            ),
            compiler_params=pltpu.CompilerParams(
                dimension_semantics=("parallel",),
                vmem_limit_bytes=int(vmem_limit_bytes),
            ),
        )(x2, w, b2)

    try:
        out = _run(True)
    except Exception:
        # TODO(synk): drop this fallback once pl.Buffered(1) residency is
        # guaranteed on the deployed jax; the constant index_map alone already
        # avoids re-DMA, it just keeps a redundant second W buffer in VMEM.
        out = _run(False)

    return out.reshape(B, T, Dout)


def reference_forward(x, w, b):
    xf = x.astype(jnp.float32)
    h = xf * jax.nn.sigmoid(xf)
    return jnp.einsum("btd,de->bte", h, w.astype(jnp.float32)) + b.astype(jnp.float32)


if __name__ == "__main__":
    # Small shapes consistent with the module: dim=32, scale=4, bias=True.
    batch, seq, dim, scale = 2, 8, 32, 4
    key = jax.random.PRNGKey(0)
    kx, kw, kb = jax.random.split(key, 3)

    x = jax.random.normal(kx, (batch, seq, dim), dtype=jnp.float32)
    w = jax.random.normal(kw, (dim, dim * scale), dtype=jnp.float32) * (1.0 / dim ** 0.5)
    b = jax.random.normal(kb, (dim * scale,), dtype=jnp.float32) * 0.01

    ref = reference_forward(x, w, b)

    # 1) f32, default tiling (>=2 grid steps so megacore gets both cores).
    out = jax.block_until_ready(adaln_forward(x, w, b))
    assert out.shape == (batch, seq, dim * scale)
    # Tolerance covers MXU multi-pass f32 matmul precision.
    assert jnp.allclose(out, ref, atol=2e-2, rtol=2e-2), "f32 mismatch"

    # 2) Non-divisible M path: 14 rows, block_m=8 -> grid=(2,), masked tail
    #    block, no pad/slice HBM round trip.
    x_ragged = x[:, :7, :]
    out_ragged = jax.block_until_ready(adaln_forward(x_ragged, w, b, block_m=8))
    assert out_ragged.shape == (batch, 7, dim * scale)
    assert jnp.allclose(out_ragged, ref[:, :7, :], atol=2e-2, rtol=2e-2), "ragged mismatch"

    # 3) bf16 end to end: native bf16 SiLU, bf16 MXU operands, f32 accumulate.
    x_bf, w_bf, b_bf = (t.astype(jnp.bfloat16) for t in (x, w, b))
    out_bf = jax.block_until_ready(adaln_forward(x_bf, w_bf, b_bf))
    ref_bf = reference_forward(x_bf, w_bf, b_bf)
    assert out_bf.dtype == jnp.bfloat16
    assert jnp.allclose(out_bf.astype(jnp.float32), ref_bf, atol=5e-2, rtol=5e-2), "bf16 mismatch"

    print("KERNEL_OK")
</pallas_src>

<mosaic_0001>
module attributes {stable_mosaic.version = 11 : i64} {
  func.func @adaln_kernel(%arg0: i32, %arg1: memref<8x32xf32, #tpu.memory_space<vmem>>, %arg2: memref<32x128xf32, #tpu.memory_space<vmem>>, %arg3: memref<1x128xf32, #tpu.memory_space<vmem>>, %arg4: memref<8x128xf32, #tpu.memory_space<vmem>>) attributes {dimension_semantics = [#tpu.dimension_semantics<parallel>], iteration_bounds = array<i64: 2>, scalar_prefetch = 0 : i64, scratch_operands = 0 : i64, tpu.core_type = #tpu.core_type<tc>, window_params = [{transform_indices = @transform_0, window_bounds = array<i64: 8, 32>}, {pipeline_mode = #tpu.pipeline_mode<synchronous>, transform_indices = @transform_1, window_bounds = array<i64: 32, 128>}, {pipeline_mode = #tpu.pipeline_mode<synchronous>, transform_indices = @transform_2, window_bounds = array<i64: 1, 128>}, {transform_indices = @transform_3, window_bounds = array<i64: 8, 128>}]} {
    %c0 = arith.constant 0 : index
    %c0_0 = arith.constant 0 : index
    %0 = vector.load %arg1[%c0, %c0_0] : memref<8x32xf32, #tpu.memory_space<vmem>>, vector<8x32xf32>
    %1 = arith.negf %0 : vector<8x32xf32>
    %2 = math.exp %1 : vector<8x32xf32>
    %cst = arith.constant 1.000000e+00 : f32
    %3 = vector.broadcast %cst : f32 to vector<8x32xf32>
    %4 = arith.addf %3, %2 : vector<8x32xf32>
    %5 = arith.divf %3, %4 : vector<8x32xf32>
    %6 = arith.mulf %0, %5 : vector<8x32xf32>
    %c0_1 = arith.constant 0 : index
    %c0_2 = arith.constant 0 : index
    %7 = vector.load %arg2[%c0_1, %c0_2] : memref<32x128xf32, #tpu.memory_space<vmem>>, vector<32x128xf32>
    %cst_3 = arith.constant dense<0.000000e+00> : vector<8x128xf32>
    %8 = tpu.matmul %6, %7, %cst_3 {dimension_numbers = #tpu.dot_dimension_numbers<[1], [0], [0], [1], [0, 0, 1, 1], [], []>} : vector<8x32xf32>, vector<32x128xf32>, vector<8x128xf32> -> vector<8x128xf32>
    %c0_4 = arith.constant 0 : index
    %c0_5 = arith.constant 0 : index
    %9 = vector.load %arg3[%c0_4, %c0_5] : memref<1x128xf32, #tpu.memory_space<vmem>>, vector<1x128xf32>
    %10 = vector.broadcast %9 : vector<1x128xf32> to vector<8x128xf32>
    %11 = arith.addf %8, %10 : vector<8x128xf32>
    %c0_6 = arith.constant 0 : index
    %c0_7 = arith.constant 0 : index
    %12 = vector.load %arg4[%c0_6, %c0_7] : memref<8x128xf32, #tpu.memory_space<vmem>>, vector<8x128xf32>
    tpu.vector_store %arg4[%c0_6, %c0_7], %11 {strides = array<i32>} : memref<8x128xf32, #tpu.memory_space<vmem>>, vector<8x128xf32>,
    return
  }
  func.func @transform_0(%arg0: i32) -> (i32, i32) {
    %c0_i32 = arith.constant 0 : i32
    %c0_i32_0 = arith.constant 0 : i32
    return %arg0, %c0_i32 : i32, i32
  }
  func.func @transform_1(%arg0: i32) -> (i32, i32) {
    %c0_i32 = arith.constant 0 : i32
    %c0_i32_0 = arith.constant 0 : i32
    %c0_i32_1 = arith.constant 0 : i32
    return %c0_i32, %c0_i32_0 : i32, i32
  }
  func.func @transform_2(%arg0: i32) -> (i32, i32) {
    %c0_i32 = arith.constant 0 : i32
    %c0_i32_0 = arith.constant 0 : i32
    %c0_i32_1 = arith.constant 0 : i32
    return %c0_i32, %c0_i32_0 : i32, i32
  }
  func.func @transform_3(%arg0: i32) -> (i32, i32) {
    %c0_i32 = arith.constant 0 : i32
    %c0_i32_0 = arith.constant 0 : i32
    return %arg0, %c0_i32 : i32, i32
  }
}

module attributes {stable_mosaic.version = 11 : i64} {
  func.func @adaln_kernel(%arg0: i32, %arg1: memref<8x32xf32, #tpu.memory_space<vmem>>, %arg2: memref<32x128xf32, #tpu.memory_space<vmem>>, %arg3: memref<1x128xf32, #tpu.memory_space<vmem>>, %arg4: memref<8x128xf32, #tpu.memory_space<vmem>>) attributes {dimension_semantics = [#tpu.dimension_semantics<parallel>], iteration_bounds = array<i64: 2>, scalar_prefetch = 0 : i64, scratch_operands = 0 : i64, tpu.core_type = #tpu.core_type<tc>, window_params = [{transform_indices = @transform_0, window_bounds = array<i64: 8, 32>}, {pipeline_mode = #tpu.pipeline_mode<synchronous>, transform_indices = @transform_1, window_bounds = array<i64: 32, 128>}, {pipeline_mode = #tpu.pipeline_mode<synchronous>, transform_indices = @transform_2, window_bounds = array<i64: 1, 128>}, {transform_indices = @transform_3, window_bounds = array<i64: 8, 128>}]} {
    %c0 = arith.constant 0 : index
    %c0_0 = arith.constant 0 : index
    %0 = vector.load %arg1[%c0, %c0_0] : memref<8x32xf32, #tpu.memory_space<vmem>>, vector<8x32xf32>
    %1 = arith.negf %0 : vector<8x32xf32>
    %2 = math.exp %1 : vector<8x32xf32>
    %cst = arith.constant 1.000000e+00 : f32
    %3 = vector.broadcast %cst : f32 to vector<8x32xf32>
    %4 = arith.addf %3, %2 : vector<8x32xf32>
    %5 = arith.divf %3, %4 : vector<8x32xf32>
    %6 = arith.mulf %0, %5 : vector<8x32xf32>
    %c0_1 = arith.constant 0 : index
    %c0_2 = arith.constant 0 : index
    %7 = vector.load %arg2[%c0_1, %c0_2] : memref<32x128xf32, #tpu.memory_space<vmem>>, vector<32x128xf32>
    %cst_3 = arith.constant dense<0.000000e+00> : vector<8x128xf32>
    %8 = tpu.matmul %6, %7, %cst_3 {dimension_numbers = #tpu.dot_dimension_numbers<[1], [0], [0], [1], [0, 0, 1, 1], [], []>} : vector<8x32xf32>, vector<32x128xf32>, vector<8x128xf32> -> vector<8x128xf32>
    %c0_4 = arith.constant 0 : index
    %c0_5 = arith.constant 0 : index
    %9 = vector.load %arg3[%c0_4, %c0_5] : memref<1x128xf32, #tpu.memory_space<vmem>>, vector<1x128xf32>
    %10 = vector.broadcast %9 : vector<1x128xf32> to vector<8x128xf32>
    %11 = arith.addf %8, %10 : vector<8x128xf32>
    %c0_6 = arith.constant 0 : index
    %c0_7 = arith.constant 0 : index
    %12 = vector.load %arg4[%c0_6, %c0_7] : memref<8x128xf32, #tpu.memory_space<vmem>>, vector<8x128xf32>
    tpu.vector_store %arg4[%c0_6, %c0_7], %11 {strides = array<i32>} : memref<8x128xf32, #tpu.memory_space<vmem>>, vector<8x128xf32>,
    return
  }
  func.func @transform_0(%arg0: i32) -> (i32, i32) {
    %c0_i32 = arith.constant 0 : i32
    %c0_i32_0 = arith.constant 0 : i32
    return %arg0, %c0_i32 : i32, i32
  }
  func.func @transform_1(%arg0: i32) -> (i32, i32) {
    %c0_i32 = arith.constant 0 : i32
    %c0_i32_0 = arith.constant 0 : i32
    %c0_i32_1 = arith.constant 0 : i32
    return %c0_i32, %c0_i32_0 : i32, i32
  }
  func.func @transform_2(%arg0: i32) -> (i32, i32) {
    %c0_i32 = arith.constant 0 : i32
    %c0_i32_0 = arith.constant 0 : i32
    %c0_i32_1 = arith.constant 0 : i32
    return %c0_i32, %c0_i32_0 : i32, i32
  }
  func.func @transform_3(%arg0: i32) -> (i32, i32) {
    %c0_i32 = arith.constant 0 : i32
    %c0_i32_0 = arith.constant 0 : i32
    return %arg0, %c0_i32 : i32, i32
  }
}

</mosaic_0001>

<llo_original>
// kernel: tpu_custom_call.1
$region0: #{tpu_custom_call.1}
  #allocation0 [shape = 'u32[]', space=smem, size = 0x4, offset = 0x4, fixed_abs, tag = 'smem constant byte address 0x4 - core index']
  #allocation1 [shape = 'u32[144,128]{1,0:T(1,128)}', space=vmem, size = 0x12000, scoped, tag = 'internal scratch']
  %s0 = inlined_call_operand.hbm [shape: f32[16,32], index: 0, kind: input, shape index: {}]
  %s1 = inlined_call_operand.hbm [shape: f32[32,128], index: 1, kind: input, shape index: {}]
  %s2 = inlined_call_operand.vmem [shape: f32[1,128], index: 2, kind: input, shape index: {}]
  %s3 = inlined_call_operand.hbm [shape: f32[16,128], index: 3, kind: output, shape index: {}]
  %s4 = sld [smem:[#allocation0]]
  $region53: #{tpu_custom_call.1} parent=0
    _
  %s6 = ssub.s32 1, %s4
  %s7 = scalar_select 0, %s6, %s4
  $region1: #{tpu_custom_call.1} parent=0
    #allocation2 [shape = 'u8[8192]{0}', space=vmem, size = 0x2000, scoped, tag = 'input window, operand 0']
    #allocation3 [shape = 's32[2]{0}', space=sflag, size = 0x8, scoped, tag = 'scoped memory for tpu_custom_call.1']
    #allocation4 [shape = 's32[2]{0}', space=sflag, size = 0x8, scoped, tag = 'scoped memory for tpu_custom_call.1']
    #allocation5 [shape = 'u8[16384]{0}', space=vmem, size = 0x4000, scoped, tag = 'input window, operand 1, single buffered']
    #allocation6 [shape = 's32[1]{0}', space=sflag, size = 0x4, scoped, tag = 'scoped memory for tpu_custom_call.1']
    #allocation7 [shape = 'u8[8192]{0}', space=vmem, size = 0x2000, scoped, tag = 'output window, operand 0']
    %8 = vsyncpa [#allocation3], 0
    %s9 = scalar_lea.sflag [#allocation3], 1
    %10 = vsyncpa %s9, 0
    %11 = vsyncpa [#allocation6], 0
    %12 = vsyncpa [#allocation4], 0
    %s13 = scalar_lea.sflag [#allocation4], 1
    %14 = vsyncpa %s13, 0
    loop: start=0, step=1, limit=4
    $region2: #{tpu_custom_call.1} parent=1 // loop_pre_header
      _
    $region3: #{tpu_custom_call.1} parent=1 // loop_header
      %s16 = sphi 0, %s20
      %p17 = scmp.ge.s32.totalorder %s16, 4
      %s26 = sphi 0, %s28
      %s29 = sphi 0, %s26
      %s30 = sphi 0, %s29
      %s46 = sphi 0, %s30
      %s50 = sphi 0, %s50
      %s52 = sphi 0, %s50
      %s53 = sphi 0, %s52
      %s67 = sphi 0, %s53
      %s71 = sphi 0, %s71
      %s73 = sphi 0, %s71
      %s74 = sphi 0, %s73
      %s88 = sphi 0, %s74
      %s94 = sphi 0, %s96
      %s97 = sphi 0, %s94
      %s98 = sphi 0, %s97
      %s114 = sphi 0, %s98
    $region4: #{tpu_custom_call.1} parent=1 // loop_header_branch
      %19 = sbr.rel (%p17) target = $region8
    $region5: #{tpu_custom_call.1} parent=1 // loop_body
      %s21 = ssub.s32 %s16, 1
      %s22 = ssub.s32 %s16, 2
      %s23 = sadd.s32 %s16, 1
      %s24 = ssub.s32 %s16, %s23
      %p25 = scmp.eq.s32.totalorder %s24, 0
      %s27 = sadd.s32 %s26, 1
      %s28 = scalar_select %p25, %s26, %s27
      %p31 = pneg %p25
      %p32 = scmp.eq.s32.totalorder %s16, 1
      %p33 = por %p31, %p32
      %p34 = scmp.ne.s32.totalorder %s26, %s29
      %p35 = scmp.eq.s32.totalorder %s16, 0
      %p36 = por %p34, %p35
      %p37 = scmp.ne.s32.totalorder %s26, %s29
      %p38 = scmp.eq.s32.totalorder %s21, 1
      %p39 = por %p37, %p38
      %p40 = scmp.ne.s32.totalorder %s29, %s30
      %p41 = scmp.eq.s32.totalorder %s21, 0
      %p42 = por %p40, %p41
      %p43 = scmp.ne.s32.totalorder %s29, %s30
      %p44 = scmp.eq.s32.totalorder %s22, 1
      %p45 = por %p43, %p44
      %p47 = scmp.ne.s32.totalorder %s30, %s46
      %p48 = scmp.eq.s32.totalorder %s22, 0
      %p49 = por %p47, %p48
      %s51 = sadd.s32 %s50, 1
      %p54 = scmp.eq.s32.totalorder %s16, 1
      %p55 = scmp.ne.s32.totalorder %s50, %s52
      %p56 = scmp.eq.s32.totalorder %s16, 0
      %p57 = por %p55, %p56
      %p58 = scmp.ne.s32.totalorder %s50, %s52
      %p59 = scmp.eq.s32.totalorder %s21, 1
      %p60 = por %p58, %p59
      %p61 = scmp.ne.s32.totalorder %s52, %s53
      %p62 = scmp.eq.s32.totalorder %s21, 0
      %p63 = por %p61, %p62
      %p64 = scmp.ne.s32.totalorder %s52, %s53
      %p65 = scmp.eq.s32.totalorder %s22, 1
      %p66 = por %p64, %p65
      %p68 = scmp.ne.s32.totalorder %s53, %s67
      %p69 = scmp.eq.s32.totalorder %s22, 0
      %p70 = por %p68, %p69
      %s72 = sadd.s32 %s71, 1
      %p75 = scmp.eq.s32.totalorder %s16, 1
      %p76 = scmp.ne.s32.totalorder %s71, %s73
      %p77 = scmp.eq.s32.totalorder %s16, 0
      %p78 = por %p76, %p77
      %p79 = scmp.ne.s32.totalorder %s71, %s73
      %p80 = scmp.eq.s32.totalorder %s21, 1
      %p81 = por %p79, %p80
      %p82 = scmp.ne.s32.totalorder %s73, %s74
      %p83 = scmp.eq.s32.totalorder %s21, 0
      %p84 = por %p82, %p83
      %p85 = scmp.ne.s32.totalorder %s73, %s74
      %p86 = scmp.eq.s32.totalorder %s22, 1
      %p87 = por %p85, %p86
      %p89 = scmp.ne.s32.totalorder %s74, %s88
      %p90 = scmp.eq.s32.totalorder %s22, 0
      %p91 = por %p89, %p90
      %s92 = ssub.s32 %s16, %s23
      %p93 = scmp.eq.s32.totalorder %s92, 0
      %s95 = sadd.s32 %s94, 1
      %s96 = scalar_select %p93, %s94, %s95
      %p99 = pneg %p93
      %p100 = scmp.eq.s32.totalorder %s16, 1
      %p101 = por %p99, %p100
      %p102 = scmp.ne.s32.totalorder %s94, %s97
      %p103 = scmp.eq.s32.totalorder %s16, 0
      %p104 = por %p102, %p103
      %p105 = scmp.ne.s32.totalorder %s94, %s97
      %p106 = scmp.eq.s32.totalorder %s21, 1
      %p107 = por %p105, %p106
      %p108 = scmp.ne.s32.totalorder %s97, %s98
      %p109 = scmp.eq.s32.totalorder %s21, 0
      %p110 = por %p108, %p109
      %p111 = scmp.ne.s32.totalorder %s97, %s98
      %p112 = scmp.eq.s32.totalorder %s22, 1
      %p113 = por %p111, %p112
      %p115 = scmp.ne.s32.totalorder %s98, %s114
      %p116 = scmp.eq.s32.totalorder %s22, 0
      %p117 = por %p115, %p116
      %p118 = scmp.le.s32.totalorder 1, %s16
      %p119 = scmp.lt.s32.totalorder %s16, 3
      %p120 = pnand %p118, %p119
      %p121 = pneg %p120
      // Predicated region
      $region9: #{tpu_custom_call.1} parent=5 // pred_check
        _
      $region10: #{tpu_custom_call.1} parent=5 // pred_check_branch
        %123 = sbr.rel (%p120) target = $region12
      $region11: #{tpu_custom_call.1} parent=5 // pred_region
        %s124 = ssub.s32 %s16, 1
        // Predicated region
        $region13: #{tpu_custom_call.1} parent=11 // pred_check
          %p125 = pneg %p63
        $region14: #{tpu_custom_call.1} parent=11 // pred_check_branch
          %127 = sbr.rel (%p125) target = $region16
        $region15: #{tpu_custom_call.1} parent=11 // pred_region
          %s129 = ssub.s32 512, 512
          %130 = vsyncadd [#allocation6], %s129
          %s131 = sshll.u32 [#allocation5], 4
          %s132 = int_to_ptr.vmem [resolvable:$true] %s131
          %137 = dma.hbm_to_vmem [thread:$0]  %s1, 512, %s132, [#allocation6], 128, 128, 8
        $region16: #{tpu_custom_call.1} parent=11 // pred_fallthru
          _
        // Predicated region
        $region17: #{tpu_custom_call.1} parent=11 // pred_check
          %p138 = pneg %p84
        $region18: #{tpu_custom_call.1} parent=11 // pred_check_branch
          %140 = sbr.rel (%p138) target = $region20
        $region19: #{tpu_custom_call.1} parent=11 // pred_region
          _
        $region20: #{tpu_custom_call.1} parent=11 // pred_fallthru
          _
      $region12: #{tpu_custom_call.1} parent=5 // pred_fallthru
        _
      %p141 = scmp.lt.s32.totalorder %s16, 2
      // Predicated region
      $region21: #{tpu_custom_call.1} parent=5 // pred_check
        %p142 = pneg %p141
      $region22: #{tpu_custom_call.1} parent=5 // pred_check_branch
        %144 = sbr.rel (%p142) target = $region24
      $region23: #{tpu_custom_call.1} parent=5 // pred_region
        // Predicated region
        $region25: #{tpu_custom_call.1} parent=23 // pred_check
          %p145 = pneg %p36
        $region26: #{tpu_custom_call.1} parent=23 // pred_check_branch
          %147 = sbr.rel (%p145) target = $region28
        $region27: #{tpu_custom_call.1} parent=23 // pred_region
          %s148 = sand.u32 %s26, 1
          %s149 = scalar_lea.sflag [#allocation3], %s148
          %s150 = sand.u32 %s26, 1
          %s151 = smul.addr %s150, 8
          %s152 = scalar_lea.vmem [#allocation2], %s151
          %s154 = ssub.s32 128, 128
          %155 = vsyncadd %s149, %s154
          %s156 = smul.addr %s16, 128
          %s157 = scalar_lea.hbm %s0, %s156
          %s159 = sshll.u32 %s152, 4
          %s160 = int_to_ptr.vmem [resolvable:$true] %s159
          %162 = dma.hbm_to_vmem [thread:$0]  %s157, 128, %s160, %s149
        $region28: #{tpu_custom_call.1} parent=23 // pred_fallthru
          _
      $region24: #{tpu_custom_call.1} parent=5 // pred_fallthru
        _
      %p163 = scmp.le.s32.totalorder 1, %s16
      %p164 = scmp.lt.s32.totalorder %s16, 3
      %p165 = pnand %p163, %p164
      %p166 = pneg %p165
      // Predicated region
      $region29: #{tpu_custom_call.1} parent=5 // pred_check
        _
      $region30: #{tpu_custom_call.1} parent=5 // pred_check_branch
        %168 = sbr.rel (%p165) target = $region32
      $region31: #{tpu_custom_call.1} parent=5 // pred_region
        %s169 = ssub.s32 %s16, 1
        %s170 = sand.u32 %s29, 1
        %s171 = scalar_lea.sflag [#allocation3], %s170
        %s172 = sand.u32 %s29, 1
        %s173 = smul.addr %s172, 8
        %s174 = scalar_lea.vmem [#allocation2], %s173
        // Predicated region
        $region33: #{tpu_custom_call.1} parent=31 // pred_check
          %p175 = pneg %p42
        $region34: #{tpu_custom_call.1} parent=31 // pred_check_branch
          %177 = sbr.rel (%p175) target = $region36
        $region35: #{tpu_custom_call.1} parent=31 // pred_region
          %178 = dma.done %s171, 128
        $region36: #{tpu_custom_call.1} parent=31 // pred_fallthru
          _
        // Predicated region
        $region37: #{tpu_custom_call.1} parent=31 // pred_check
          %p179 = pneg %p63
        $region38: #{tpu_custom_call.1} parent=31 // pred_check_branch
          %181 = sbr.rel (%p179) target = $region40
        $region39: #{tpu_custom_call.1} parent=31 // pred_region
          %182 = dma.done [#allocation6], 512
        $region40: #{tpu_custom_call.1} parent=31 // pred_fallthru
          _
        %s183 = sand.u32 %s29, 1
        %s184 = scalar_lea.sflag [#allocation3], %s183
        %s185 = sand.u32 %s29, 1
        %s186 = smul.addr %s185, 8
        %s187 = scalar_lea.vmem [#allocation2], %s186
        %p188 = pneg %p42
        %p189 = pneg %p39
        %p190 = pneg %p63
        %p191 = pneg %p60
        %p192 = pneg %p84
        %p193 = pneg %p81
        %p194 = pneg %p110
        %p195 = pneg %p107
        %s196 = sand.u32 %s97, 1
        %s197 = scalar_lea.sflag [#allocation4], %s196
        %s198 = sand.u32 %s97, 1
        %s199 = smul.addr %s198, 8
        %s200 = scalar_lea.vmem [#allocation7], %s199
        %v201 = vld [vmem:[%s174] sm:$0xff]
        %v202 = vxor.u32 %v201, 2147483648
        %v203 = vmul.f32 %v202, 1.442695
        %v204 = vpow.pop %v203
        %v205 = vadd.f32 %v204, 1.0
        %v206 = vrcp.pop %v205
        %v207 = vmul.f32 1.0, %v206
        %v208 = vmul.f32 %v201, %v207
        %v209 = vld [vmem:[#allocation5] sm:$0xff]
        %v210 = vld [vmem:[#allocation5 + $0x8] sm:$0xff]
        %v211 = vld [vmem:[#allocation5 + $0x10] sm:$0xff]
        %v212 = vld [vmem:[#allocation5 + $0x18] sm:$0xff]
        %v213 = vld [vmem:[%s2] sm:$0x1]
        %v215 = vlaneseq
        %v216 = vshrl.u32 %v215, 7
        %v217 = vsub.s32 0, %v216
        %v218 = vrot.slane %v213, %v217
        %vm220 = vcmask 261120
        %v222 = vsel %vm220, %v208, 0
        %224 = vmatprep.subr.mxu0 0.0
        %225 = vmatpush1.msra.mxu0 %v209
        %226 = vmatprep.subr.mxu0 0.0
        %227 = vmatpush1.msra.mxu0 %v210
        %228 = vmatprep.subr.mxu0 0.0
        %229 = vmatpush1.msra.mxu0 %v211
        %230 = vmatprep.subr.mxu0 0.0
        %231 = vmatpush1.msra.mxu0 %v212
        %232 = vmatprep.subr.mxu0 0.0
        %233 = vmatpush1.msra.mxu0 0.0
        %234 = vmatprep.subr.mxu0 0.0
        %235 = vmatpush1.msra.mxu0 0.0
        %236 = vmatprep.subr.mxu0 0.0
        %237 = vmatpush1.msra.mxu0 0.0
        %238 = vmatprep.subr.mxu0 0.0
        %239 = vmatpush1.msra.mxu0 0.0
        %240 = vmatprep.subr.mxu0 0.0
        %241 = vmatpush1.msra.mxu0 0.0
        %242 = vmatprep.subr.mxu0 0.0
        %243 = vmatpush1.msra.mxu0 0.0
        %244 = vmatprep.subr.mxu0 0.0
        %245 = vmatpush1.msra.mxu0 0.0
        %246 = vmatprep.subr.mxu0 0.0
        %247 = vmatpush1.msra.mxu0 0.0
        %248 = vmatprep.subr.mxu0 0.0
        %249 = vmatpush1.msra.mxu0 0.0
        %250 = vmatprep.subr.mxu0 0.0
        %251 = vmatpush1.msra.mxu0 0.0
        %252 = vmatprep.subr.mxu0 0.0
        %253 = vmatpush1.msra.mxu0 0.0
        %254 = vmatprep.subr.mxu0 0.0
        %255 = vmatpush1.msra.mxu0 0.0
        %256 = vmatprep.subr.mxu0 0.0
        %257 = vmatpush1.msra.mxu0 0.0
        %258 = vmatprep.subr.mxu0 0.0
        %259 = vmatpush1.msra.mxu0 0.0
        %260 = vmatprep.subr.mxu0 0.0
        %261 = vmatpush1.msra.mxu0 0.0
        %262 = vmatprep.subr.mxu0 0.0
        %263 = vmatpush1.msra.mxu0 0.0
        %264 = vmatprep.subr.mxu0 0.0
        %265 = vmatpush1.msra.mxu0 0.0
        %266 = vmatprep.subr.mxu0 0.0
        %267 = vmatpush1.msra.mxu0 0.0
        %268 = vmatprep.subr.mxu0 0.0
        %269 = vmatpush1.msra.mxu0 0.0
        %270 = vmatprep.subr.mxu0 0.0
        %271 = vmatpush1.msra.mxu0 0.0
        %272 = vmatprep.subr.mxu0 0.0
        %273 = vmatpush1.msra.mxu0 0.0
        %274 = vmatprep.subr.mxu0 0.0
        %275 = vmatpush1.msra.mxu0 0.0
        %276 = vmatprep.subr.mxu0 0.0
        %277 = vmatpush1.msra.mxu0 0.0
        %278 = vmatprep.subr.mxu0 0.0
        %279 = vmatpush1.msra.mxu0 0.0
        %280 = vmatprep.subr.mxu0 0.0
        %281 = vmatpush1.msra.mxu0 0.0
        %282 = vmatprep.subr.mxu0 0.0
        %283 = vmatpush1.msra.mxu0 0.0
        %284 = vmatprep.subr.mxu0 0.0
        %285 = vmatpush1.msra.mxu0 0.0
        %286 = vmatprep.subr.mxu0 0.0
        %287 = vmatpush1.msra.mxu0 0.0
        %288 = vmatprep.mubr.f32.mxu0 0.0
        %289 = vmatmul.mubr.f32.gmra.mrb[0].mxu0 %v222
        %v290 = vpop.f32.mrb[0].mxu0
        %v291 = vadd.f32 %v218, %v290
        %v292 = vpop.f32.mrb[0].mxu0
        %293 = vdwg.mxu0
        %294 = vst [vmem:[%s200] sm:$0xff] %v291
        %s295 = sand.u32 %s97, 1
        %s296 = scalar_lea.sflag [#allocation4], %s295
        %s297 = sand.u32 %s97, 1
        %s298 = smul.addr %s297, 8
        %s299 = scalar_lea.vmem [#allocation7], %s298
        // Predicated region
        $region41: #{tpu_custom_call.1} parent=31 // pred_check
          %p300 = pneg %p107
        $region42: #{tpu_custom_call.1} parent=31 // pred_check_branch
          %302 = sbr.rel (%p300) target = $region44
        $region43: #{tpu_custom_call.1} parent=31 // pred_region
          %s304 = ssub.s32 128, 128
          %305 = vsyncadd %s296, %s304
          %s306 = smul.addr %s21, 128
          %s307 = scalar_lea.hbm %s3, %s306
          %s309 = sshll.u32 %s299, 4
          %s310 = int_to_ptr.vmem [resolvable:$true] %s309
          %312 = dma.vmem_to_hbm [thread:$0]  %s310, 128, %s307, %s296
        $region44: #{tpu_custom_call.1} parent=31 // pred_fallthru
          _
      $region32: #{tpu_custom_call.1} parent=5 // pred_fallthru
        _
      %p313 = scmp.le.s32.totalorder 2, %s16
      // Predicated region
      $region45: #{tpu_custom_call.1} parent=5 // pred_check
        %p314 = pneg %p313
      $region46: #{tpu_custom_call.1} parent=5 // pred_check_branch
        %316 = sbr.rel (%p314) target = $region48
      $region47: #{tpu_custom_call.1} parent=5 // pred_region
        %s317 = ssub.s32 %s16, 2
        // Predicated region
        $region49: #{tpu_custom_call.1} parent=47 // pred_check
          %p318 = pneg %p113
        $region50: #{tpu_custom_call.1} parent=47 // pred_check_branch
          %320 = sbr.rel (%p318) target = $region52
        $region51: #{tpu_custom_call.1} parent=47 // pred_region
          %s321 = sand.u32 %s98, 1
          %s322 = scalar_lea.sflag [#allocation4], %s321
          %s323 = sand.u32 %s98, 1
          %s324 = smul.addr %s323, 8
          %s325 = scalar_lea.vmem [#allocation7], %s324
          %326 = dma.done %s322, 128
        $region52: #{tpu_custom_call.1} parent=47 // pred_fallthru
          _
      $region48: #{tpu_custom_call.1} parent=5 // pred_fallthru
        _
    $region6: #{tpu_custom_call.1} parent=1 // loop_footer
      %s20 = sadd.s32 1, %s16
    $region7: #{tpu_custom_call.1} parent=1 // loop_footer_branch
      %15 = sbr.rel target = $region3
    $region8: #{tpu_custom_call.1} parent=1 // loop_exit
      _
    %327 = vsyncpa [#allocation3], 1
    %s328 = scalar_lea.sflag [#allocation3], 1
    %329 = vsyncpa %s328, 1
    %330 = vsyncpa [#allocation6], 1
    %331 = vsyncpa [#allocation4], 1
    %s332 = scalar_lea.sflag [#allocation4], 1
    %333 = vsyncpa %s332, 1

// kernel: tpu_custom_call.1
$region0: #{tpu_custom_call.1}
  #allocation0 [shape = 'u32[]', space=smem, size = 0x4, offset = 0x4, fixed_abs, tag = 'smem constant byte address 0x4 - core index']
  #allocation1 [shape = 'u32[144,128]{1,0:T(1,128)}', space=vmem, size = 0x12000, scoped, tag = 'internal scratch']
  %s0 = inlined_call_operand.hbm [shape: f32[16,32], index: 0, kind: input, shape index: {}]
  %s1 = inlined_call_operand.hbm [shape: f32[32,128], index: 1, kind: input, shape index: {}]
  %s2 = inlined_call_operand.vmem [shape: f32[1,128], index: 2, kind: input, shape index: {}]
  %s3 = inlined_call_operand.hbm [shape: f32[16,128], index: 3, kind: output, shape index: {}]
  %s4 = sld [smem:[#allocation0]]
  $region53: #{tpu_custom_call.1} parent=0
    _
  %s6 = ssub.s32 1, %s4
  %s7 = scalar_select 0, %s6, %s4
  $region1: #{tpu_custom_call.1} parent=0
    #allocation2 [shape = 'u8[8192]{0}', space=vmem, size = 0x2000, scoped, tag = 'input window, operand 0']
    #allocation3 [shape = 's32[2]{0}', space=sflag, size = 0x8, scoped, tag = 'scoped memory for tpu_custom_call.1']
    #allocation4 [shape = 's32[2]{0}', space=sflag, size = 0x8, scoped, tag = 'scoped memory for tpu_custom_call.1']
    #allocation5 [shape = 'u8[16384]{0}', space=vmem, size = 0x4000, scoped, tag = 'input window, operand 1, single buffered']
    #allocation6 [shape = 's32[1]{0}', space=sflag, size = 0x4, scoped, tag = 'scoped memory for tpu_custom_call.1']
    #allocation7 [shape = 'u8[8192]{0}', space=vmem, size = 0x2000, scoped, tag = 'output window, operand 0']
    %8 = vsyncpa [#allocation3], 0
    %s9 = scalar_lea.sflag [#allocation3], 1
    %10 = vsyncpa %s9, 0
    %11 = vsyncpa [#allocation6], 0
    %12 = vsyncpa [#allocation4], 0
    %s13 = scalar_lea.sflag [#allocation4], 1
    %14 = vsyncpa %s13, 0
    loop: start=0, step=1, limit=4
    $region2: #{tpu_custom_call.1} parent=1 // loop_pre_header
      _
    $region3: #{tpu_custom_call.1} parent=1 // loop_header
      %s16 = sphi 0, %s20
      %p17 = scmp.ge.s32.totalorder %s16, 4
      %s26 = sphi 0, %s28
      %s29 = sphi 0, %s26
      %s30 = sphi 0, %s29
      %s46 = sphi 0, %s30
      %s50 = sphi 0, %s50
      %s52 = sphi 0, %s50
      %s53 = sphi 0, %s52
      %s67 = sphi 0, %s53
      %s71 = sphi 0, %s71
      %s73 = sphi 0, %s71
      %s74 = sphi 0, %s73
      %s88 = sphi 0, %s74
      %s94 = sphi 0, %s96
      %s97 = sphi 0, %s94
      %s98 = sphi 0, %s97
      %s114 = sphi 0, %s98
    $region4: #{tpu_custom_call.1} parent=1 // loop_header_branch
      %19 = sbr.rel (%p17) target = $region8
    $region5: #{tpu_custom_call.1} parent=1 // loop_body
      %s21 = ssub.s32 %s16, 1
      %s22 = ssub.s32 %s16, 2
      %s23 = sadd.s32 %s16, 1
      %s24 = ssub.s32 %s16, %s23
      %p25 = scmp.eq.s32.totalorder %s24, 0
      %s27 = sadd.s32 %s26, 1
      %s28 = scalar_select %p25, %s26, %s27
      %p31 = pneg %p25
      %p32 = scmp.eq.s32.totalorder %s16, 1
      %p33 = por %p31, %p32
      %p34 = scmp.ne.s32.totalorder %s26, %s29
      %p35 = scmp.eq.s32.totalorder %s16, 0
      %p36 = por %p34, %p35
      %p37 = scmp.ne.s32.totalorder %s26, %s29
      %p38 = scmp.eq.s32.totalorder %s21, 1
      %p39 = por %p37, %p38
      %p40 = scmp.ne.s32.totalorder %s29, %s30
      %p41 = scmp.eq.s32.totalorder %s21, 0
      %p42 = por %p40, %p41
      %p43 = scmp.ne.s32.totalorder %s29, %s30
      %p44 = scmp.eq.s32.totalorder %s22, 1
      %p45 = por %p43, %p44
      %p47 = scmp.ne.s32.totalorder %s30, %s46
      %p48 = scmp.eq.s32.totalorder %s22, 0
      %p49 = por %p47, %p48
      %s51 = sadd.s32 %s50, 1
      %p54 = scmp.eq.s32.totalorder %s16, 1
      %p55 = scmp.ne.s32.totalorder %s50, %s52
      %p56 = scmp.eq.s32.totalorder %s16, 0
      %p57 = por %p55, %p56
      %p58 = scmp.ne.s32.totalorder %s50, %s52
      %p59 = scmp.eq.s32.totalorder %s21, 1
      %p60 = por %p58, %p59
      %p61 = scmp.ne.s32.totalorder %s52, %s53
      %p62 = scmp.eq.s32.totalorder %s21, 0
      %p63 = por %p61, %p62
      %p64 = scmp.ne.s32.totalorder %s52, %s53
      %p65 = scmp.eq.s32.totalorder %s22, 1
      %p66 = por %p64, %p65
      %p68 = scmp.ne.s32.totalorder %s53, %s67
      %p69 = scmp.eq.s32.totalorder %s22, 0
      %p70 = por %p68, %p69
      %s72 = sadd.s32 %s71, 1
      %p75 = scmp.eq.s32.totalorder %s16, 1
      %p76 = scmp.ne.s32.totalorder %s71, %s73
      %p77 = scmp.eq.s32.totalorder %s16, 0
      %p78 = por %p76, %p77
      %p79 = scmp.ne.s32.totalorder %s71, %s73
      %p80 = scmp.eq.s32.totalorder %s21, 1
      %p81 = por %p79, %p80
      %p82 = scmp.ne.s32.totalorder %s73, %s74
      %p83 = scmp.eq.s32.totalorder %s21, 0
      %p84 = por %p82, %p83
      %p85 = scmp.ne.s32.totalorder %s73, %s74
      %p86 = scmp.eq.s32.totalorder %s22, 1
      %p87 = por %p85, %p86
      %p89 = scmp.ne.s32.totalorder %s74, %s88
      %p90 = scmp.eq.s32.totalorder %s22, 0
      %p91 = por %p89, %p90
      %s92 = ssub.s32 %s16, %s23
      %p93 = scmp.eq.s32.totalorder %s92, 0
      %s95 = sadd.s32 %s94, 1
      %s96 = scalar_select %p93, %s94, %s95
      %p99 = pneg %p93
      %p100 = scmp.eq.s32.totalorder %s16, 1
      %p101 = por %p99, %p100
      %p102 = scmp.ne.s32.totalorder %s94, %s97
      %p103 = scmp.eq.s32.totalorder %s16, 0
      %p104 = por %p102, %p103
      %p105 = scmp.ne.s32.totalorder %s94, %s97
      %p106 = scmp.eq.s32.totalorder %s21, 1
      %p107 = por %p105, %p106
      %p108 = scmp.ne.s32.totalorder %s97, %s98
      %p109 = scmp.eq.s32.totalorder %s21, 0
      %p110 = por %p108, %p109
      %p111 = scmp.ne.s32.totalorder %s97, %s98
      %p112 = scmp.eq.s32.totalorder %s22, 1
      %p113 = por %p111, %p112
      %p115 = scmp.ne.s32.totalorder %s98, %s114
      %p116 = scmp.eq.s32.totalorder %s22, 0
      %p117 = por %p115, %p116
      %p118 = scmp.le.s32.totalorder 1, %s16
      %p119 = scmp.lt.s32.totalorder %s16, 3
      %p120 = pnand %p118, %p119
      %p121 = pneg %p120
      // Predicated region
      $region9: #{tpu_custom_call.1} parent=5 // pred_check
        _
      $region10: #{tpu_custom_call.1} parent=5 // pred_check_branch
        %123 = sbr.rel (%p120) target = $region12
      $region11: #{tpu_custom_call.1} parent=5 // pred_region
        %s124 = ssub.s32 %s16, 1
        // Predicated region
        $region13: #{tpu_custom_call.1} parent=11 // pred_check
          %p125 = pneg %p63
        $region14: #{tpu_custom_call.1} parent=11 // pred_check_branch
          %127 = sbr.rel (%p125) target = $region16
        $region15: #{tpu_custom_call.1} parent=11 // pred_region
          %s129 = ssub.s32 512, 512
          %130 = vsyncadd [#allocation6], %s129
          %s131 = sshll.u32 [#allocation5], 4
          %s132 = int_to_ptr.vmem [resolvable:$true] %s131
          %137 = dma.hbm_to_vmem [thread:$0]  %s1, 512, %s132, [#allocation6], 128, 128, 8
        $region16: #{tpu_custom_call.1} parent=11 // pred_fallthru
          _
        // Predicated region
        $region17: #{tpu_custom_call.1} parent=11 // pred_check
          %p138 = pneg %p84
        $region18: #{tpu_custom_call.1} parent=11 // pred_check_branch
          %140 = sbr.rel (%p138) target = $region20
        $region19: #{tpu_custom_call.1} parent=11 // pred_region
          _
        $region20: #{tpu_custom_call.1} parent=11 // pred_fallthru
          _
      $region12: #{tpu_custom_call.1} parent=5 // pred_fallthru
        _
      %p141 = scmp.lt.s32.totalorder %s16, 2
      // Predicated region
      $region21: #{tpu_custom_call.1} parent=5 // pred_check
        %p142 = pneg %p141
      $region22: #{tpu_custom_call.1} parent=5 // pred_check_branch
        %144 = sbr.rel (%p142) target = $region24
      $region23: #{tpu_custom_call.1} parent=5 // pred_region
        // Predicated region
        $region25: #{tpu_custom_call.1} parent=23 // pred_check
          %p145 = pneg %p36
        $region26: #{tpu_custom_call.1} parent=23 // pred_check_branch
          %147 = sbr.rel (%p145) target = $region28
        $region27: #{tpu_custom_call.1} parent=23 // pred_region
          %s148 = sand.u32 %s26, 1
          %s149 = scalar_lea.sflag [#allocation3], %s148
          %s150 = sand.u32 %s26, 1
          %s151 = smul.addr %s150, 8
          %s152 = scalar_lea.vmem [#allocation2], %s151
          %s154 = ssub.s32 128, 128
          %155 = vsyncadd %s149, %s154
          %s156 = smul.addr %s16, 128
          %s157 = scalar_lea.hbm %s0, %s156
          %s159 = sshll.u32 %s152, 4
          %s160 = int_to_ptr.vmem [resolvable:$true] %s159
          %162 = dma.hbm_to_vmem [thread:$0]  %s157, 128, %s160, %s149
        $region28: #{tpu_custom_call.1} parent=23 // pred_fallthru
          _
      $region24: #{tpu_custom_call.1} parent=5 // pred_fallthru
        _
      %p163 = scmp.le.s32.totalorder 1, %s16
      %p164 = scmp.lt.s32.totalorder %s16, 3
      %p165 = pnand %p163, %p164
      %p166 = pneg %p165
      // Predicated region
      $region29: #{tpu_custom_call.1} parent=5 // pred_check
        _
      $region30: #{tpu_custom_call.1} parent=5 // pred_check_branch
        %168 = sbr.rel (%p165) target = $region32
      $region31: #{tpu_custom_call.1} parent=5 // pred_region
        %s169 = ssub.s32 %s16, 1
        %s170 = sand.u32 %s29, 1
        %s171 = scalar_lea.sflag [#allocation3], %s170
        %s172 = sand.u32 %s29, 1
        %s173 = smul.addr %s172, 8
        %s174 = scalar_lea.vmem [#allocation2], %s173
        // Predicated region
        $region33: #{tpu_custom_call.1} parent=31 // pred_check
          %p175 = pneg %p42
        $region34: #{tpu_custom_call.1} parent=31 // pred_check_branch
          %177 = sbr.rel (%p175) target = $region36
        $region35: #{tpu_custom_call.1} parent=31 // pred_region
          %178 = dma.done %s171, 128
        $region36: #{tpu_custom_call.1} parent=31 // pred_fallthru
          _
        // Predicated region
        $region37: #{tpu_custom_call.1} parent=31 // pred_check
          %p179 = pneg %p63
        $region38: #{tpu_custom_call.1} parent=31 // pred_check_branch
          %181 = sbr.rel (%p179) target = $region40
        $region39: #{tpu_custom_call.1} parent=31 // pred_region
          %182 = dma.done [#allocation6], 512
        $region40: #{tpu_custom_call.1} parent=31 // pred_fallthru
          _
        %s183 = sand.u32 %s29, 1
        %s184 = scalar_lea.sflag [#allocation3], %s183
        %s185 = sand.u32 %s29, 1
        %s186 = smul.addr %s185, 8
        %s187 = scalar_lea.vmem [#allocation2], %s186
        %p188 = pneg %p42
        %p189 = pneg %p39
        %p190 = pneg %p63
        %p191 = pneg %p60
        %p192 = pneg %p84
        %p193 = pneg %p81
        %p194 = pneg %p110
        %p195 = pneg %p107
        %s196 = sand.u32 %s97, 1
        %s197 = scalar_lea.sflag [#allocation4], %s196
        %s198 = sand.u32 %s97, 1
        %s199 = smul.addr %s198, 8
        %s200 = scalar_lea.vmem [#allocation7], %s199
        %v201 = vld [vmem:[%s174] sm:$0xff]
        %v202 = vxor.u32 %v201, 2147483648
        %v203 = vmul.f32 %v202, 1.442695
        %v204 = vpow.pop %v203
        %v205 = vadd.f32 %v204, 1.0
        %v206 = vrcp.pop %v205
        %v207 = vmul.f32 1.0, %v206
        %v208 = vmul.f32 %v201, %v207
        %v209 = vld [vmem:[#allocation5] sm:$0xff]
        %v210 = vld [vmem:[#allocation5 + $0x8] sm:$0xff]
        %v211 = vld [vmem:[#allocation5 + $0x10] sm:$0xff]
        %v212 = vld [vmem:[#allocation5 + $0x18] sm:$0xff]
        %v213 = vld [vmem:[%s2] sm:$0x1]
        %v215 = vlaneseq
        %v216 = vshrl.u32 %v215, 7
        %v217 = vsub.s32 0, %v216
        %v218 = vrot.slane %v213, %v217
        %vm220 = vcmask 261120
        %v222 = vsel %vm220, %v208, 0
        %224 = vmatprep.subr.mxu0 0.0
        %225 = vmatpush1.msra.mxu0 %v209
        %226 = vmatprep.subr.mxu0 0.0
        %227 = vmatpush1.msra.mxu0 %v210
        %228 = vmatprep.subr.mxu0 0.0
        %229 = vmatpush1.msra.mxu0 %v211
        %230 = vmatprep.subr.mxu0 0.0
        %231 = vmatpush1.msra.mxu0 %v212
        %232 = vmatprep.subr.mxu0 0.0
        %233 = vmatpush1.msra.mxu0 0.0
        %234 = vmatprep.subr.mxu0 0.0
        %235 = vmatpush1.msra.mxu0 0.0
        %236 = vmatprep.subr.mxu0 0.0
        %237 = vmatpush1.msra.mxu0 0.0
        %238 = vmatprep.subr.mxu0 0.0
        %239 = vmatpush1.msra.mxu0 0.0
        %240 = vmatprep.subr.mxu0 0.0
        %241 = vmatpush1.msra.mxu0 0.0
        %242 = vmatprep.subr.mxu0 0.0
        %243 = vmatpush1.msra.mxu0 0.0
        %244 = vmatprep.subr.mxu0 0.0
        %245 = vmatpush1.msra.mxu0 0.0
        %246 = vmatprep.subr.mxu0 0.0
        %247 = vmatpush1.msra.mxu0 0.0
        %248 = vmatprep.subr.mxu0 0.0
        %249 = vmatpush1.msra.mxu0 0.0
        %250 = vmatprep.subr.mxu0 0.0
        %251 = vmatpush1.msra.mxu0 0.0
        %252 = vmatprep.subr.mxu0 0.0
        %253 = vmatpush1.msra.mxu0 0.0
        %254 = vmatprep.subr.mxu0 0.0
        %255 = vmatpush1.msra.mxu0 0.0
        %256 = vmatprep.subr.mxu0 0.0
        %257 = vmatpush1.msra.mxu0 0.0
        %258 = vmatprep.subr.mxu0 0.0
        %259 = vmatpush1.msra.mxu0 0.0
        %260 = vmatprep.subr.mxu0 0.0
        %261 = vmatpush1.msra.mxu0 0.0
        %262 = vmatprep.subr.mxu0 0.0
        %263 = vmatpush1.msra.mxu0 0.0
        %264 = vmatprep.subr.mxu0 0.0
        %265 = vmatpush1.msra.mxu0 0.0
        %266 = vmatprep.subr.mxu0 0.0
        %267 = vmatpush1.msra.mxu0 0.0
        %268 = vmatprep.subr.mxu0 0.0
        %269 = vmatpush1.msra.mxu0 0.0
        %270 = vmatprep.subr.mxu0 0.0
        %271 = vmatpush1.msra.mxu0 0.0
        %272 = vmatprep.subr.mxu0 0.0
        %273 = vmatpush1.msra.mxu0 0.0
        %274 = vmatprep.subr.mxu0 0.0
        %275 = vmatpush1.msra.mxu0 0.0
        %276 = vmatprep.subr.mxu0 0.0
        %277 = vmatpush1.msra.mxu0 0.0
        %278 = vmatprep.subr.mxu0 0.0
        %279 = vmatpush1.msra.mxu0 0.0
        %280 = vmatprep.subr.mxu0 0.0
        %281 = vmatpush1.msra.mxu0 0.0
        %282 = vmatprep.subr.mxu0 0.0
        %283 = vmatpush1.msra.mxu0 0.0
        %284 = vmatprep.subr.mxu0 0.0
        %285 = vmatpush1.msra.mxu0 0.0
        %286 = vmatprep.subr.mxu0 0.0
        %287 = vmatpush1.msra.mxu0 0.0
        %288 = vmatprep.mubr.f32.mxu0 0.0
        %289 = vmatmul.mubr.f32.gmra.mrb[0].mxu0 %v222
        %v290 = vpop.f32.mrb[0].mxu0
        %v291 = vadd.f32 %v218, %v290
        %v292 = vpop.f32.mrb[0].mxu0
        %293 = vdwg.mxu0
        %294 = vst [vmem:[%s200] sm:$0xff] %v291
        %s295 = sand.u32 %s97, 1
        %s296 = scalar_lea.sflag [#allocation4], %s295
        %s297 = sand.u32 %s97, 1
        %s298 = smul.addr %s297, 8
        %s299 = scalar_lea.vmem [#allocation7], %s298
        // Predicated region
        $region41: #{tpu_custom_call.1} parent=31 // pred_check
          %p300 = pneg %p107
        $region42: #{tpu_custom_call.1} parent=31 // pred_check_branch
          %302 = sbr.rel (%p300) target = $region44
        $region43: #{tpu_custom_call.1} parent=31 // pred_region
          %s304 = ssub.s32 128, 128
          %305 = vsyncadd %s296, %s304
          %s306 = smul.addr %s21, 128
          %s307 = scalar_lea.hbm %s3, %s306
          %s309 = sshll.u32 %s299, 4
          %s310 = int_to_ptr.vmem [resolvable:$true] %s309
          %312 = dma.vmem_to_hbm [thread:$0]  %s310, 128, %s307, %s296
        $region44: #{tpu_custom_call.1} parent=31 // pred_fallthru
          _
      $region32: #{tpu_custom_call.1} parent=5 // pred_fallthru
        _
      %p313 = scmp.le.s32.totalorder 2, %s16
      // Predicated region
      $region45: #{tpu_custom_call.1} parent=5 // pred_check
        %p314 = pneg %p313
      $region46: #{tpu_custom_call.1} parent=5 // pred_check_branch
        %316 = sbr.rel (%p314) target = $region48
      $region47: #{tpu_custom_call.1} parent=5 // pred_region
        %s317 = ssub.s32 %s16, 2
        // Predicated region
        $region49: #{tpu_custom_call.1} parent=47 // pred_check
          %p318 = pneg %p113
        $region50: #{tpu_custom_call.1} parent=47 // pred_check_branch
          %320 = sbr.rel (%p318) target = $region52
        $region51: #{tpu_custom_call.1} parent=47 // pred_region
          %s321 = sand.u32 %s98, 1
          %s322 = scalar_lea.sflag [#allocation4], %s321
          %s323 = sand.u32 %s98, 1
          %s324 = smul.addr %s323, 8
          %s325 = scalar_lea.vmem [#allocation7], %s324
          %326 = dma.done %s322, 128
        $region52: #{tpu_custom_call.1} parent=47 // pred_fallthru
          _
      $region48: #{tpu_custom_call.1} parent=5 // pred_fallthru
        _
    $region6: #{tpu_custom_call.1} parent=1 // loop_footer
      %s20 = sadd.s32 1, %s16
    $region7: #{tpu_custom_call.1} parent=1 // loop_footer_branch
      %15 = sbr.rel target = $region3
    $region8: #{tpu_custom_call.1} parent=1 // loop_exit
      _
    %327 = vsyncpa [#allocation3], 1
    %s328 = scalar_lea.sflag [#allocation3], 1
    %329 = vsyncpa %s328, 1
    %330 = vsyncpa [#allocation6], 1
    %331 = vsyncpa [#allocation4], 1
    %s332 = scalar_lea.sflag [#allocation4], 1
    %333 = vsyncpa %s332, 1

</llo_original>
